<compile_context>
chip_gen: v6e
topology: v6e:2x2x1
jax: 0.10.0
libtpu: 0.0.40
codegen_flags: <defaults>
</compile_context>

<pallas_src>
import functools

import jax
import jax.numpy as jnp
from jax import lax
from jax.experimental import pallas as pl
from jax.experimental.pallas import tpu as pltpu

NUM_HIDDEN = 3     # -> num_middle = NUM_HIDDEN - 1 = 2 middle layers
DIM_HIDDEN = 32


def pinn2d_kernel(bounds_ref, x_ref, y_ref, w_in_x_ref, w_in_y_ref, b_in_ref,
                  w_mid_ref, b_mid_ref, w_out_ref, b_out_ref, o_ref,
                  *, num_middle, pinning, mxu_dtype):
    # Lane-dense input tiles: (1, TILE_N) f32.
    x = x_ref[...]
    y = y_ref[...]

    # layer_in: tanh(W_in^T @ [x;y] + b_in) as pure-VPU broadcasts
    # (H,1) * (1,T) -> (H,T); no sublane-crossing slices, no matmul.
    h = jnp.tanh(w_in_x_ref[...] * x + w_in_y_ref[...] * y + b_in_ref[...])

    # Middle layers on the MXU: (H,H) @ (H,T); bf16 inputs (v6e/v7x fast path),
    # f32 accumulation, f32 tanh.  num_middle is static -> unrolled.
    for l in range(num_middle):
        h = jnp.tanh(
            jnp.dot(w_mid_ref[l].astype(mxu_dtype), h.astype(mxu_dtype),
                    preferred_element_type=jnp.float32)
            + b_mid_ref[l])

    # layer_out: (1,H) @ (H,T) -> (1,T), lane-dense.
    logits = jnp.dot(w_out_ref[...].astype(mxu_dtype), h.astype(mxu_dtype),
                     preferred_element_type=jnp.float32) + b_out_ref[...]

    if pinning:
        # Global min/max are precomputed in the wrapper and read from SMEM
        # (per-tile reductions would be wrong once the batch is tiled).
        x_min = bounds_ref[0, 0]
        x_max = bounds_ref[0, 1]
        y_min = bounds_ref[0, 2]
        y_max = bounds_ref[0, 3]
        logits = logits * (x - x_min) * (x - x_max) * (y - y_min) * (y - y_max)

    o_ref[...] = logits          # unmasked, lane-dense (1, TILE_N) store


def pinn2d_forward(x, y, params, *, pinning=False, tile_n=1024,
                   mxu_dtype=jnp.bfloat16):
    """x, y: (N, 1) f32. Returns (N, 1) f32, matching the PyTorch module."""
    w_in, b_in, w_mid, b_mid, w_out, b_out = params
    n = x.shape[0]
    num_middle = w_mid.shape[0]
    dim_hidden = w_in.shape[1]

    # Batch on the lane axis, padded to a multiple of the tile (tile is a
    # multiple of 128 lanes).  Budget is trivial even for v7x's 64 MiB VMEM.
    tile_n = max(128, (min(tile_n, ((n + 127) // 128) * 128) // 128) * 128)
    n_pad = pl.cdiv(n, tile_n) * tile_n
    x_row = jnp.pad(x.reshape(1, n).astype(jnp.float32), ((0, 0), (0, n_pad - n)))
    y_row = jnp.pad(y.reshape(1, n).astype(jnp.float32), ((0, 0), (0, n_pad - n)))

    # Repack parameters for the features-on-sublanes layout (done once, in XLA).
    w_in_x = w_in[0:1, :].T                                  # (H, 1)
    w_in_y = w_in[1:2, :].T                                  # (H, 1)
    b_in_t = b_in.reshape(dim_hidden, 1)                     # (H, 1)
    w_mid_t = jnp.transpose(w_mid, (0, 2, 1))                # (L, H, H) == W_l^T
    b_mid_t = b_mid.reshape(num_middle, dim_hidden, 1)       # (L, H, 1)
    w_out_t = w_out.T                                        # (1, H)
    b_out_t = b_out.reshape(1, 1)                            # (1, 1)

    # Pinning bounds hoisted out of the kernel (global over the full batch).
    if pinning:
        bounds = jnp.stack([jnp.min(x), jnp.max(x), jnp.min(y), jnp.max(y)])
    else:
        bounds = jnp.zeros((4,), jnp.float32)
    bounds = bounds.astype(jnp.float32).reshape(1, 4)

    grid = (n_pad // tile_n,)

    def const_spec(shape):
        nd = len(shape)
        return pl.BlockSpec(shape, lambda i, _nd=nd: (0,) * _nd)

    kernel = functools.partial(pinn2d_kernel, num_middle=num_middle,
                               pinning=pinning, mxu_dtype=mxu_dtype)

    out = pl.pallas_call(
        kernel,
        out_shape=jax.ShapeDtypeStruct((1, n_pad), jnp.float32),
        grid=grid,
        in_specs=[
            pl.BlockSpec((1, 4), lambda i: (0, 0),
                         memory_space=pltpu.MemorySpace.SMEM),   # pinning bounds
            pl.BlockSpec((1, tile_n), lambda i: (0, i)),          # x (lane-dense)
            pl.BlockSpec((1, tile_n), lambda i: (0, i)),          # y (lane-dense)
            const_spec(w_in_x.shape),
            const_spec(w_in_y.shape),
            const_spec(b_in_t.shape),
            const_spec(w_mid_t.shape),
            const_spec(b_mid_t.shape),
            const_spec(w_out_t.shape),
            const_spec(b_out_t.shape),
        ],
        out_specs=pl.BlockSpec((1, tile_n), lambda i: (0, i)),
        compiler_params=pltpu.CompilerParams(
            dimension_semantics=("parallel",)),   # lets v7x use both TCs
    )(bounds, x_row, y_row, w_in_x, w_in_y, b_in_t,
      w_mid_t, b_mid_t, w_out_t, b_out_t)

    return out[0, :n].reshape(n, 1)


def pinn2d_ref(x, y, params, *, pinning=False, mxu_dtype=None):
    """Pure-JAX reference mirroring the PyTorch forward.

    mxu_dtype=None     -> strict f32 math (HIGHEST matmul precision).
    mxu_dtype=bfloat16 -> mirrors the kernel's bf16-input / f32-accum dots.
    """
    w_in, b_in, w_mid, b_mid, w_out, b_out = params

    def mm(a, b):
        if mxu_dtype is None:
            return jnp.dot(a, b, preferred_element_type=jnp.float32,
                           precision=lax.Precision.HIGHEST)
        return jnp.dot(a.astype(mxu_dtype), b.astype(mxu_dtype),
                       preferred_element_type=jnp.float32)

    # layer_in written elementwise so both precision paths are exact here.
    h = jnp.tanh(x * w_in[0:1, :] + y * w_in[1:2, :] + b_in)
    for l in range(w_mid.shape[0]):
        h = jnp.tanh(mm(h, w_mid[l]) + b_mid[l])
    logits = mm(h, w_out) + b_out
    if pinning:
        logits = logits * (x - jnp.min(x)) * (x - jnp.max(x)) \
                        * (y - jnp.min(y)) * (y - jnp.max(y))
    return logits


def init_params(key, num_hidden, dim_hidden):
    """Deterministic init matching nn.Linear shapes (stored as (in, out))."""
    num_middle = num_hidden - 1
    keys = jax.random.split(key, 6)

    def uni(k, shape, fan_in):
        bound = 1.0 / jnp.sqrt(jnp.float32(fan_in))
        return jax.random.uniform(k, shape, jnp.float32, -bound, bound)

    w_in = uni(keys[0], (2, dim_hidden), 2)                        # layer_in.weight^T
    b_in = uni(keys[1], (1, dim_hidden), 2)                        # layer_in.bias
    w_mid = uni(keys[2], (num_middle, dim_hidden, dim_hidden), dim_hidden)
    b_mid = uni(keys[3], (num_middle, 1, dim_hidden), dim_hidden)
    w_out = uni(keys[4], (dim_hidden, 1), dim_hidden)              # layer_out.weight^T
    b_out = uni(keys[5], (1, 1), dim_hidden)                       # layer_out.bias
    return (w_in, b_in, w_mid, b_mid, w_out, b_out)


if __name__ == "__main__":
    key = jax.random.PRNGKey(0)
    k_p, k_d = jax.random.split(key)
    params = init_params(k_p, NUM_HIDDEN, DIM_HIDDEN)

    # Two batch sizes: one tiny (pads to a single 128-lane tile) and one that
    # exercises padding + a multi-step parallel grid (1000 -> 2 tiles of 512).
    for n in (64, 1000):
        kx, ky = jax.random.split(jax.random.fold_in(k_d, n))
        x = jax.random.uniform(kx, (n, 1), jnp.float32)
        y = jax.random.uniform(ky, (n, 1), jnp.float32)

        for pinning in (False, True):
            # Strict-f32 MXU path vs strict-f32 reference (exact module semantics).
            out_f32 = jax.block_until_ready(
                pinn2d_forward(x, y, params, pinning=pinning, tile_n=512,
                               mxu_dtype=jnp.float32))
            ref_f32 = pinn2d_ref(x, y, params, pinning=pinning, mxu_dtype=None)
            assert out_f32.shape == (n, 1) and out_f32.dtype == jnp.float32
            assert jnp.allclose(out_f32, ref_f32, atol=3e-5, rtol=3e-5), \
                f"f32 mismatch (n={n}, pinning={pinning})"

            # bf16-MXU fast path (v6e/v7x) vs numerically matched reference.
            out_bf16 = jax.block_until_ready(
                pinn2d_forward(x, y, params, pinning=pinning, tile_n=512,
                               mxu_dtype=jnp.bfloat16))
            ref_bf16 = pinn2d_ref(x, y, params, pinning=pinning,
                                  mxu_dtype=jnp.bfloat16)
            assert jnp.allclose(out_bf16, ref_bf16, atol=1e-4, rtol=1e-3), \
                f"bf16 mismatch (n={n}, pinning={pinning})"

    print("KERNEL_OK")
</pallas_src>

<mosaic_0001>
module attributes {stable_mosaic.version = 11 : i64} {
  func.func @pinn2d_kernel(%arg0: i32, %arg1: memref<1x4xf32, #tpu.memory_space<smem>>, %arg2: memref<1x128xf32, #tpu.memory_space<vmem>>, %arg3: memref<1x128xf32, #tpu.memory_space<vmem>>, %arg4: memref<32x1xf32, #tpu.memory_space<vmem>>, %arg5: memref<32x1xf32, #tpu.memory_space<vmem>>, %arg6: memref<32x1xf32, #tpu.memory_space<vmem>>, %arg7: memref<2x32x32xf32, #tpu.memory_space<vmem>>, %arg8: memref<2x32x1xf32, #tpu.memory_space<vmem>>, %arg9: memref<1x32xf32, #tpu.memory_space<vmem>>, %arg10: memref<1x1xf32, #tpu.memory_space<vmem>>, %arg11: memref<1x128xf32, #tpu.memory_space<vmem>>) attributes {dimension_semantics = [#tpu.dimension_semantics<parallel>], iteration_bounds = array<i64: 1>, scalar_prefetch = 0 : i64, scratch_operands = 0 : i64, tpu.core_type = #tpu.core_type<tc>, window_params = [{transform_indices = @transform_0, window_bounds = array<i64: 1, 4>}, {transform_indices = @transform_1, window_bounds = array<i64: 1, 128>}, {transform_indices = @transform_2, window_bounds = array<i64: 1, 128>}, {pipeline_mode = #tpu.pipeline_mode<synchronous>, transform_indices = @transform_3, window_bounds = array<i64: 32, 1>}, {pipeline_mode = #tpu.pipeline_mode<synchronous>, transform_indices = @transform_4, window_bounds = array<i64: 32, 1>}, {pipeline_mode = #tpu.pipeline_mode<synchronous>, transform_indices = @transform_5, window_bounds = array<i64: 32, 1>}, {pipeline_mode = #tpu.pipeline_mode<synchronous>, transform_indices = @transform_6, window_bounds = array<i64: 2, 32, 32>}, {pipeline_mode = #tpu.pipeline_mode<synchronous>, transform_indices = @transform_7, window_bounds = array<i64: 2, 32, 1>}, {pipeline_mode = #tpu.pipeline_mode<synchronous>, transform_indices = @transform_8, window_bounds = array<i64: 1, 32>}, {pipeline_mode = #tpu.pipeline_mode<synchronous>, transform_indices = @transform_9, window_bounds = array<i64: 1, 1>}, {transform_indices = @transform_10, window_bounds = array<i64: 1, 128>}]} {
    %c0 = arith.constant 0 : index
    %c0_0 = arith.constant 0 : index
    %0 = vector.load %arg2[%c0, %c0_0] : memref<1x128xf32, #tpu.memory_space<vmem>>, vector<1x128xf32>
    %c0_1 = arith.constant 0 : index
    %c0_2 = arith.constant 0 : index
    %1 = vector.load %arg3[%c0_1, %c0_2] : memref<1x128xf32, #tpu.memory_space<vmem>>, vector<1x128xf32>
    %c0_3 = arith.constant 0 : index
    %c0_4 = arith.constant 0 : index
    %2 = vector.load %arg4[%c0_3, %c0_4] : memref<32x1xf32, #tpu.memory_space<vmem>>, vector<32x1xf32>
    %3 = vector.broadcast %2 : vector<32x1xf32> to vector<32x128xf32>
    %4 = vector.broadcast %0 : vector<1x128xf32> to vector<32x128xf32>
    %5 = arith.mulf %3, %4 : vector<32x128xf32>
    %c0_5 = arith.constant 0 : index
    %c0_6 = arith.constant 0 : index
    %6 = vector.load %arg5[%c0_5, %c0_6] : memref<32x1xf32, #tpu.memory_space<vmem>>, vector<32x1xf32>
    %7 = vector.broadcast %6 : vector<32x1xf32> to vector<32x128xf32>
    %8 = vector.broadcast %1 : vector<1x128xf32> to vector<32x128xf32>
    %9 = arith.mulf %7, %8 : vector<32x128xf32>
    %10 = arith.addf %5, %9 : vector<32x128xf32>
    %c0_7 = arith.constant 0 : index
    %c0_8 = arith.constant 0 : index
    %11 = vector.load %arg6[%c0_7, %c0_8] : memref<32x1xf32, #tpu.memory_space<vmem>>, vector<32x1xf32>
    %12 = vector.broadcast %11 : vector<32x1xf32> to vector<32x128xf32>
    %13 = arith.addf %10, %12 : vector<32x128xf32>
    %14 = math.tanh %13 : vector<32x128xf32>
    %c0_9 = arith.constant 0 : index
    %c0_10 = arith.constant 0 : index
    %c0_11 = arith.constant 0 : index
    %15 = vector.load %arg7[%c0_9, %c0_10, %c0_11] : memref<2x32x32xf32, #tpu.memory_space<vmem>>, vector<1x32x32xf32>
    %16 = vector.shape_cast %15 : vector<1x32x32xf32> to vector<32x32xf32>
    %cst = arith.constant dense<0.000000e+00> : vector<32x128xf32>
    %17 = tpu.matmul %16, %14, %cst {dimension_numbers = #tpu.dot_dimension_numbers<[1], [0], [0], [1], [0, 0, 1, 1], [], []>} : vector<32x32xf32>, vector<32x128xf32>, vector<32x128xf32> -> vector<32x128xf32>
    %c0_12 = arith.constant 0 : index
    %c0_13 = arith.constant 0 : index
    %c0_14 = arith.constant 0 : index
    %18 = vector.load %arg8[%c0_12, %c0_13, %c0_14] : memref<2x32x1xf32, #tpu.memory_space<vmem>>, vector<1x32x1xf32>
    %19 = vector.shape_cast %18 : vector<1x32x1xf32> to vector<32x1xf32>
    %20 = vector.broadcast %19 : vector<32x1xf32> to vector<32x128xf32>
    %21 = arith.addf %17, %20 : vector<32x128xf32>
    %22 = math.tanh %21 : vector<32x128xf32>
    %c1 = arith.constant 1 : index
    %c0_15 = arith.constant 0 : index
    %c0_16 = arith.constant 0 : index
    %23 = vector.load %arg7[%c1, %c0_15, %c0_16] : memref<2x32x32xf32, #tpu.memory_space<vmem>>, vector<1x32x32xf32>
    %24 = vector.shape_cast %23 : vector<1x32x32xf32> to vector<32x32xf32>
    %cst_17 = arith.constant dense<0.000000e+00> : vector<32x128xf32>
    %25 = tpu.matmul %24, %22, %cst_17 {dimension_numbers = #tpu.dot_dimension_numbers<[1], [0], [0], [1], [0, 0, 1, 1], [], []>} : vector<32x32xf32>, vector<32x128xf32>, vector<32x128xf32> -> vector<32x128xf32>
    %c1_18 = arith.constant 1 : index
    %c0_19 = arith.constant 0 : index
    %c0_20 = arith.constant 0 : index
    %26 = vector.load %arg8[%c1_18, %c0_19, %c0_20] : memref<2x32x1xf32, #tpu.memory_space<vmem>>, vector<1x32x1xf32>
    %27 = vector.shape_cast %26 : vector<1x32x1xf32> to vector<32x1xf32>
    %28 = vector.broadcast %27 : vector<32x1xf32> to vector<32x128xf32>
    %29 = arith.addf %25, %28 : vector<32x128xf32>
    %30 = math.tanh %29 : vector<32x128xf32>
    %c0_21 = arith.constant 0 : index
    %c0_22 = arith.constant 0 : index
    %31 = vector.load %arg9[%c0_21, %c0_22] : memref<1x32xf32, #tpu.memory_space<vmem>>, vector<1x32xf32>
    %cst_23 = arith.constant dense<0.000000e+00> : vector<1x128xf32>
    %32 = tpu.matmul %31, %30, %cst_23 {dimension_numbers = #tpu.dot_dimension_numbers<[1], [0], [0], [1], [0, 0, 1, 1], [], []>} : vector<1x32xf32>, vector<32x128xf32>, vector<1x128xf32> -> vector<1x128xf32>
    %c0_24 = arith.constant 0 : index
    %c0_25 = arith.constant 0 : index
    %33 = vector.load %arg10[%c0_24, %c0_25] : memref<1x1xf32, #tpu.memory_space<vmem>>, vector<1x1xf32>
    %34 = vector.broadcast %33 : vector<1x1xf32> to vector<1x128xf32>
    %35 = arith.addf %32, %34 : vector<1x128xf32>
    %c0_26 = arith.constant 0 : index
    %c0_27 = arith.constant 0 : index
    %36 = vector.load %arg11[%c0_26, %c0_27] : memref<1x128xf32, #tpu.memory_space<vmem>>, vector<1x128xf32>
    tpu.vector_store %arg11[%c0_26, %c0_27], %35 {strides = array<i32>} : memref<1x128xf32, #tpu.memory_space<vmem>>, vector<1x128xf32>,
    return
  }
  func.func @transform_0(%arg0: i32) -> (i32, i32) {
    %c0_i32 = arith.constant 0 : i32
    %c0_i32_0 = arith.constant 0 : i32
    %c0_i32_1 = arith.constant 0 : i32
    return %c0_i32, %c0_i32_0 : i32, i32
  }
  func.func @transform_1(%arg0: i32) -> (i32, i32) {
    %c0_i32 = arith.constant 0 : i32
    %c0_i32_0 = arith.constant 0 : i32
    return %c0_i32, %arg0 : i32, i32
  }
  func.func @transform_2(%arg0: i32) -> (i32, i32) {
    %c0_i32 = arith.constant 0 : i32
    %c0_i32_0 = arith.constant 0 : i32
    return %c0_i32, %arg0 : i32, i32
  }
  func.func @transform_3(%arg0: i32) -> (i32, i32) {
    %c0_i32 = arith.constant 0 : i32
    %c0_i32_0 = arith.constant 0 : i32
    %c0_i32_1 = arith.constant 0 : i32
    return %c0_i32, %c0_i32_0 : i32, i32
  }
  func.func @transform_4(%arg0: i32) -> (i32, i32) {
    %c0_i32 = arith.constant 0 : i32
    %c0_i32_0 = arith.constant 0 : i32
    %c0_i32_1 = arith.constant 0 : i32
    return %c0_i32, %c0_i32_0 : i32, i32
  }
  func.func @transform_5(%arg0: i32) -> (i32, i32) {
    %c0_i32 = arith.constant 0 : i32
    %c0_i32_0 = arith.constant 0 : i32
    %c0_i32_1 = arith.constant 0 : i32
    return %c0_i32, %c0_i32_0 : i32, i32
  }
  func.func @transform_6(%arg0: i32) -> (i32, i32, i32) {
    %c0_i32 = arith.constant 0 : i32
    %c0_i32_0 = arith.constant 0 : i32
    %c0_i32_1 = arith.constant 0 : i32
    %c0_i32_2 = arith.constant 0 : i32
    return %c0_i32, %c0_i32_0, %c0_i32_1 : i32, i32, i32
  }
  func.func @transform_7(%arg0: i32) -> (i32, i32, i32) {
    %c0_i32 = arith.constant 0 : i32
    %c0_i32_0 = arith.constant 0 : i32
    %c0_i32_1 = arith.constant 0 : i32
    %c0_i32_2 = arith.constant 0 : i32
    return %c0_i32, %c0_i32_0, %c0_i32_1 : i32, i32, i32
  }
  func.func @transform_8(%arg0: i32) -> (i32, i32) {
    %c0_i32 = arith.constant 0 : i32
    %c0_i32_0 = arith.constant 0 : i32
    %c0_i32_1 = arith.constant 0 : i32
    return %c0_i32, %c0_i32_0 : i32, i32
  }
  func.func @transform_9(%arg0: i32) -> (i32, i32) {
    %c0_i32 = arith.constant 0 : i32
    %c0_i32_0 = arith.constant 0 : i32
    %c0_i32_1 = arith.constant 0 : i32
    return %c0_i32, %c0_i32_0 : i32, i32
  }
  func.func @transform_10(%arg0: i32) -> (i32, i32) {
    %c0_i32 = arith.constant 0 : i32
    %c0_i32_0 = arith.constant 0 : i32
    return %c0_i32, %arg0 : i32, i32
  }
}

</mosaic_0001>

<llo_original>
// kernel: tpu_custom_call.1
$region0: #{tpu_custom_call.1}
  #allocation0 [shape = 'u32[]', space=smem, size = 0x4, offset = 0x4, fixed_abs, tag = 'smem constant byte address 0x4 - core index']
  #allocation1 [shape = 'u32[144,128]{1,0:T(1,128)}', space=vmem, size = 0x12000, scoped, tag = 'internal scratch']
  #allocation2 [shape = 'f32[1,1]{1,0:T(1,128)S(1)}', space=vmem, size = 0x200, scoped, tag = 'scoped memory for tpu_custom_call.1']
  %s0 = inlined_call_operand.vmem [shape: f32[1,4], index: 0, kind: input, shape index: {}]
  %s1 = inlined_call_operand.vmem [shape: f32[1,128], index: 1, kind: input, shape index: {}]
  %s2 = inlined_call_operand.vmem [shape: f32[1,128], index: 2, kind: input, shape index: {}]
  %s3 = inlined_call_operand.vmem [shape: f32[32,1], index: 3, kind: input, shape index: {}]
  %s4 = inlined_call_operand.vmem [shape: f32[32,1], index: 4, kind: input, shape index: {}]
  %s5 = inlined_call_operand.vmem [shape: f32[32,1], index: 5, kind: input, shape index: {}]
  %s6 = inlined_call_operand.vmem [shape: f32[2,32,32], index: 6, kind: input, shape index: {}]
  %s7 = inlined_call_operand.vmem [shape: f32[2,32,1], index: 7, kind: input, shape index: {}]
  %s8 = inlined_call_operand.vmem [shape: f32[1,32], index: 8, kind: input, shape index: {}]
  %s9 = inlined_call_operand.<no memory space> [shape: f32[1,1], index: 9, kind: input, shape index: {}]
  %s10 = inlined_call_operand.hbm [shape: f32[1,128], index: 10, kind: output, shape index: {}]
  %s11 = sld [smem:[#allocation0]]
  $region54: #{tpu_custom_call.1} parent=0
    _
  %s13 = ssub.s32 1, %s11
  %s14 = scalar_select 0, %s13, %s11
  %v15 = vstv %s9
  %16 = vst [vmem:[#allocation2] sm:$0x1] %v15
  $region1: #{tpu_custom_call.1} parent=0
    #allocation3 [shape = 'u8[512]{0}', space=smem, size = 0x200, scoped, tag = 'input window, operand 0, single buffered']
    #allocation4 [shape = 's32[1]{0}', space=sflag, size = 0x4, scoped, tag = 'scoped memory for tpu_custom_call.1']
    #allocation5 [shape = 's32[1]{0}', space=sflag, size = 0x4, scoped, tag = 'scoped memory for tpu_custom_call.1']
    #allocation6 [shape = 'u8[512]{0}', space=vmem, size = 0x400, scoped, tag = 'output window, operand 0, single buffered']
    %17 = vsyncpa [#allocation5], 0
    %18 = vsyncpa [#allocation4], 0
    // Predicated region
    $region2: #{tpu_custom_call.1} parent=1 // pred_check
      _
    $region3: #{tpu_custom_call.1} parent=1 // pred_check_branch
      %20 = sbr.rel (0) target = $region5
    $region4: #{tpu_custom_call.1} parent=1 // pred_region
      %s22 = ssub.s32 16, 16
      %23 = vsyncadd [#allocation5], %s22
      %s25 = sshll.u32 %s0, 4
      %s26 = int_to_ptr.vmem [resolvable:$true] %s25
      %28 = dma.vmem_to_smem %s26, 16, [#allocation3], [#allocation5]
    $region5: #{tpu_custom_call.1} parent=1 // pred_fallthru
      _
    // Predicated region
    $region6: #{tpu_custom_call.1} parent=1 // pred_check
      _
    $region7: #{tpu_custom_call.1} parent=1 // pred_check_branch
      %30 = sbr.rel (0) target = $region9
    $region8: #{tpu_custom_call.1} parent=1 // pred_region
      _
    $region9: #{tpu_custom_call.1} parent=1 // pred_fallthru
      _
    // Predicated region
    $region10: #{tpu_custom_call.1} parent=1 // pred_check
      _
    $region11: #{tpu_custom_call.1} parent=1 // pred_check_branch
      %32 = sbr.rel (0) target = $region13
    $region12: #{tpu_custom_call.1} parent=1 // pred_region
      _
    $region13: #{tpu_custom_call.1} parent=1 // pred_fallthru
      _
    // Predicated region
    $region14: #{tpu_custom_call.1} parent=1 // pred_check
      _
    $region15: #{tpu_custom_call.1} parent=1 // pred_check_branch
      %34 = sbr.rel (0) target = $region17
    $region16: #{tpu_custom_call.1} parent=1 // pred_region
      _
    $region17: #{tpu_custom_call.1} parent=1 // pred_fallthru
      _
    // Predicated region
    $region18: #{tpu_custom_call.1} parent=1 // pred_check
      _
    $region19: #{tpu_custom_call.1} parent=1 // pred_check_branch
      %36 = sbr.rel (0) target = $region21
    $region20: #{tpu_custom_call.1} parent=1 // pred_region
      _
    $region21: #{tpu_custom_call.1} parent=1 // pred_fallthru
      _
    // Predicated region
    $region22: #{tpu_custom_call.1} parent=1 // pred_check
      _
    $region23: #{tpu_custom_call.1} parent=1 // pred_check_branch
      %38 = sbr.rel (0) target = $region25
    $region24: #{tpu_custom_call.1} parent=1 // pred_region
      _
    $region25: #{tpu_custom_call.1} parent=1 // pred_fallthru
      _
    // Predicated region
    $region26: #{tpu_custom_call.1} parent=1 // pred_check
      _
    $region27: #{tpu_custom_call.1} parent=1 // pred_check_branch
      %40 = sbr.rel (0) target = $region29
    $region28: #{tpu_custom_call.1} parent=1 // pred_region
      _
    $region29: #{tpu_custom_call.1} parent=1 // pred_fallthru
      _
    // Predicated region
    $region30: #{tpu_custom_call.1} parent=1 // pred_check
      _
    $region31: #{tpu_custom_call.1} parent=1 // pred_check_branch
      %42 = sbr.rel (0) target = $region33
    $region32: #{tpu_custom_call.1} parent=1 // pred_region
      _
    $region33: #{tpu_custom_call.1} parent=1 // pred_fallthru
      _
    // Predicated region
    $region34: #{tpu_custom_call.1} parent=1 // pred_check
      _
    $region35: #{tpu_custom_call.1} parent=1 // pred_check_branch
      %44 = sbr.rel (0) target = $region37
    $region36: #{tpu_custom_call.1} parent=1 // pred_region
      _
    $region37: #{tpu_custom_call.1} parent=1 // pred_fallthru
      _
    // Predicated region
    $region38: #{tpu_custom_call.1} parent=1 // pred_check
      _
    $region39: #{tpu_custom_call.1} parent=1 // pred_check_branch
      %46 = sbr.rel (0) target = $region41
    $region40: #{tpu_custom_call.1} parent=1 // pred_region
      _
    $region41: #{tpu_custom_call.1} parent=1 // pred_fallthru
      _
    // Predicated region
    $region42: #{tpu_custom_call.1} parent=1 // pred_check
      _
    $region43: #{tpu_custom_call.1} parent=1 // pred_check_branch
      %48 = sbr.rel (0) target = $region45
    $region44: #{tpu_custom_call.1} parent=1 // pred_region
      %49 = dma.done [#allocation5], 16
    $region45: #{tpu_custom_call.1} parent=1 // pred_fallthru
      _
    %50 = sfence
    %v51 = vld [vmem:[%s1] sm:$0x1]
    %v52 = vld [vmem:[%s2] sm:$0x1]
    %v53 = vld [vmem:[%s3] sm:$0xff]
    %v54 = vld [vmem:[%s3 + $0x8] sm:$0xff]
    %v55 = vld [vmem:[%s3 + $0x10] sm:$0xff]
    %v56 = vld [vmem:[%s3 + $0x18] sm:$0xff]
    %58 = vset.pattern.permute.xlu0 0
    %59 = vperm.xlu0 %58, %v53
    %v60 = vpop.permute.xlu0 %59
    %63 = vset.pattern.permute.xlu0 0
    %64 = vperm.xlu0 %63, %v54
    %v65 = vpop.permute.xlu0 %64
    %68 = vset.pattern.permute.xlu0 0
    %69 = vperm.xlu0 %68, %v55
    %v70 = vpop.permute.xlu0 %69
    %73 = vset.pattern.permute.xlu0 0
    %74 = vperm.xlu0 %73, %v56
    %v75 = vpop.permute.xlu0 %74
    %v78 = vlaneseq
    %v79 = vshrl.u32 %v78, 7
    %v80 = vsub.s32 0, %v79
    %v81 = vrot.slane %v51, %v80
    %v83 = vmul.f32 %v60, %v81
    %v84 = vmul.f32 %v65, %v81
    %v85 = vmul.f32 %v70, %v81
    %v86 = vmul.f32 %v75, %v81
    %v87 = vld [vmem:[%s4] sm:$0xff]
    %v88 = vld [vmem:[%s4 + $0x8] sm:$0xff]
    %v89 = vld [vmem:[%s4 + $0x10] sm:$0xff]
    %v90 = vld [vmem:[%s4 + $0x18] sm:$0xff]
    %92 = vset.pattern.permute.xlu0 0
    %93 = vperm.xlu0 %92, %v87
    %v94 = vpop.permute.xlu0 %93
    %97 = vset.pattern.permute.xlu0 0
    %98 = vperm.xlu0 %97, %v88
    %v99 = vpop.permute.xlu0 %98
    %102 = vset.pattern.permute.xlu0 0
    %103 = vperm.xlu0 %102, %v89
    %v104 = vpop.permute.xlu0 %103
    %107 = vset.pattern.permute.xlu0 0
    %108 = vperm.xlu0 %107, %v90
    %v109 = vpop.permute.xlu0 %108
    %v112 = vlaneseq
    %v113 = vshrl.u32 %v112, 7
    %v114 = vsub.s32 0, %v113
    %v115 = vrot.slane %v52, %v114
    %v117 = vmul.f32 %v94, %v115
    %v118 = vmul.f32 %v99, %v115
    %v119 = vmul.f32 %v104, %v115
    %v120 = vmul.f32 %v109, %v115
    %v121 = vadd.f32 %v83, %v117
    %v122 = vadd.f32 %v84, %v118
    %v123 = vadd.f32 %v85, %v119
    %v124 = vadd.f32 %v86, %v120
    %v125 = vld [vmem:[%s5] sm:$0xff]
    %v126 = vld [vmem:[%s5 + $0x8] sm:$0xff]
    %v127 = vld [vmem:[%s5 + $0x10] sm:$0xff]
    %v128 = vld [vmem:[%s5 + $0x18] sm:$0xff]
    %130 = vset.pattern.permute.xlu0 0
    %131 = vperm.xlu0 %130, %v125
    %v132 = vpop.permute.xlu0 %131
    %135 = vset.pattern.permute.xlu0 0
    %136 = vperm.xlu0 %135, %v126
    %v137 = vpop.permute.xlu0 %136
    %140 = vset.pattern.permute.xlu0 0
    %141 = vperm.xlu0 %140, %v127
    %v142 = vpop.permute.xlu0 %141
    %145 = vset.pattern.permute.xlu0 0
    %146 = vperm.xlu0 %145, %v128
    %v147 = vpop.permute.xlu0 %146
    %v149 = vadd.f32 %v121, %v132
    %v150 = vadd.f32 %v122, %v137
    %v151 = vadd.f32 %v123, %v142
    %v152 = vadd.f32 %v124, %v147
    %v153 = vtanh.pop %v149
    %v154 = vtanh.pop %v150
    %v155 = vtanh.pop %v151
    %v156 = vtanh.pop %v152
    %v157 = vld [vmem:[%s6] sm:$0xff]
    %v158 = vld [vmem:[%s6 + $0x8] sm:$0xff]
    %v159 = vld [vmem:[%s6 + $0x10] sm:$0xff]
    %v160 = vld [vmem:[%s6 + $0x18] sm:$0xff]
    %v161 = vld [vmem:[%s7] sm:$0xff]
    %v162 = vld [vmem:[%s7 + $0x8] sm:$0xff]
    %v163 = vld [vmem:[%s7 + $0x10] sm:$0xff]
    %v164 = vld [vmem:[%s7 + $0x18] sm:$0xff]
    %166 = vset.pattern.permute.xlu0 0
    %167 = vperm.xlu0 %166, %v161
    %v168 = vpop.permute.xlu0 %167
    %171 = vset.pattern.permute.xlu0 0
    %172 = vperm.xlu0 %171, %v162
    %v173 = vpop.permute.xlu0 %172
    %176 = vset.pattern.permute.xlu0 0
    %177 = vperm.xlu0 %176, %v163
    %v178 = vpop.permute.xlu0 %177
    %181 = vset.pattern.permute.xlu0 0
    %182 = vperm.xlu0 %181, %v164
    %v183 = vpop.permute.xlu0 %182
    %vm185 = vcmask 261120
    %v187 = vsel %vm185, %v157, 0
    %v190 = vsel %vm185, %v158, 0
    %v193 = vsel %vm185, %v159, 0
    %v196 = vsel %vm185, %v160, 0
    %198 = vmatprep.subr.mxu0 0.0
    %199 = vmatpush1.msra.mxu0 0.0
    %200 = vmatprep.subr.mxu0 0.0
    %201 = vmatpush1.msra.mxu0 0.0
    %202 = vmatprep.subr.mxu0 0.0
    %203 = vmatpush1.msra.mxu0 0.0
    %204 = vmatprep.subr.mxu0 0.0
    %205 = vmatpush1.msra.mxu0 0.0
    %206 = vmatprep.subr.mxu0 0.0
    %207 = vmatpush1.msra.mxu0 0.0
    %208 = vmatprep.subr.mxu0 0.0
    %209 = vmatpush1.msra.mxu0 0.0
    %210 = vmatprep.subr.mxu0 0.0
    %211 = vmatpush1.msra.mxu0 0.0
    %212 = vmatprep.subr.mxu0 0.0
    %213 = vmatpush1.msra.mxu0 0.0
    %214 = vmatprep.subr.mxu0 0.0
    %215 = vmatpush1.msra.mxu0 0.0
    %216 = vmatprep.subr.mxu0 0.0
    %217 = vmatpush1.msra.mxu0 0.0
    %218 = vmatprep.subr.mxu0 0.0
    %219 = vmatpush1.msra.mxu0 0.0
    %220 = vmatprep.subr.mxu0 0.0
    %221 = vmatpush1.msra.mxu0 0.0
    %222 = vmatprep.subr.mxu0 0.0
    %223 = vmatpush1.msra.mxu0 %v156
    %224 = vmatprep.subr.mxu0 0.0
    %225 = vmatpush1.msra.mxu0 %v155
    %226 = vmatprep.subr.mxu0 0.0
    %227 = vmatpush1.msra.mxu0 %v154
    %228 = vmatprep.subr.mxu0 0.0
    %229 = vmatpush1.msra.mxu0 %v153
    %230 = vmatprep.subr.mxu0 0.0
    %231 = vmatpush2.msra.mxu0 0.0
    %232 = vmatprep.subr.mxu0 0.0
    %233 = vmatpush2.msra.mxu0 0.0
    %234 = vmatprep.subr.mxu0 0.0
    %235 = vmatpush2.msra.mxu0 0.0
    %236 = vmatprep.subr.mxu0 0.0
    %237 = vmatpush2.msra.mxu0 0.0
    %238 = vmatprep.subr.mxu0 0.0
    %239 = vmatpush2.msra.mxu0 0.0
    %240 = vmatprep.subr.mxu0 0.0
    %241 = vmatpush2.msra.mxu0 0.0
    %242 = vmatprep.subr.mxu0 0.0
    %243 = vmatpush2.msra.mxu0 0.0
    %244 = vmatprep.subr.mxu0 0.0
    %245 = vmatpush2.msra.mxu0 0.0
    %246 = vmatprep.subr.mxu0 0.0
    %247 = vmatpush2.msra.mxu0 0.0
    %248 = vmatprep.subr.mxu0 0.0
    %249 = vmatpush2.msra.mxu0 0.0
    %250 = vmatprep.subr.mxu0 0.0
    %251 = vmatpush2.msra.mxu0 0.0
    %252 = vmatprep.subr.mxu0 0.0
    %253 = vmatpush2.msra.mxu0 0.0
    %254 = vmatprep.subr.mxu0 0.0
    %255 = vmatpush2.msra.mxu0 0.0
    %256 = vmatprep.subr.mxu0 0.0
    %257 = vmatpush2.msra.mxu0 0.0
    %258 = vmatprep.subr.mxu0 0.0
    %259 = vmatpush2.msra.mxu0 0.0
    %260 = vmatprep.subr.mxu0 0.0
    %261 = vmatpush2.msra.mxu0 0.0
    %262 = vmatprep.mubr.f32.mxu0 0.0
    %263 = vmatmul.mubr.f32.gmra.mxu0 %v187
    %v264 = vpop.f32.mrf.mxu0
    %v265 = vadd.f32 %v168, %v264
    %v266 = vpop.f32.mrf.mxu0
    %267 = vmatprep.mubr.f32.mxu0 0.0
    %268 = vmatmul.mubr.f32.gmra.mxu0 %v190
    %v269 = vpop.f32.mrf.mxu0
    %v270 = vadd.f32 %v173, %v269
    %v271 = vpop.f32.mrf.mxu0
    %272 = vmatprep.mubr.f32.mxu0 0.0
    %273 = vmatmul.mubr.f32.gmra.mxu0 %v193
    %v274 = vpop.f32.mrf.mxu0
    %v275 = vadd.f32 %v178, %v274
    %v276 = vpop.f32.mrf.mxu0
    %277 = vmatprep.mubr.f32.mxu0 0.0
    %278 = vmatmul.mubr.f32.gmra.mxu0 %v196
    %v279 = vpop.f32.mrf.mxu0
    %v280 = vadd.f32 %v183, %v279
    %v281 = vpop.f32.mrf.mxu0
    %282 = vdwg.mxu0
    %v283 = vtanh.pop %v265
    %v284 = vtanh.pop %v270
    %v285 = vtanh.pop %v275
    %v286 = vtanh.pop %v280
    %s287 = scalar_lea.vmem %s6, 32
    %v288 = vld [vmem:[%s287] sm:$0xff]
    %v289 = vld [vmem:[%s287 + $0x8] sm:$0xff]
    %v290 = vld [vmem:[%s287 + $0x10] sm:$0xff]
    %v291 = vld [vmem:[%s287 + $0x18] sm:$0xff]
    %s292 = scalar_lea.vmem %s7, 32
    %v293 = vld [vmem:[%s292] sm:$0xff]
    %v294 = vld [vmem:[%s292 + $0x8] sm:$0xff]
    %v295 = vld [vmem:[%s292 + $0x10] sm:$0xff]
    %v296 = vld [vmem:[%s292 + $0x18] sm:$0xff]
    %298 = vset.pattern.permute.xlu0 0
    %299 = vperm.xlu0 %298, %v293
    %v300 = vpop.permute.xlu0 %299
    %303 = vset.pattern.permute.xlu0 0
    %304 = vperm.xlu0 %303, %v294
    %v305 = vpop.permute.xlu0 %304
    %308 = vset.pattern.permute.xlu0 0
    %309 = vperm.xlu0 %308, %v295
    %v310 = vpop.permute.xlu0 %309
    %313 = vset.pattern.permute.xlu0 0
    %314 = vperm.xlu0 %313, %v296
    %v315 = vpop.permute.xlu0 %314
    %v318 = vsel %vm185, %v288, 0
    %v321 = vsel %vm185, %v289, 0
    %v324 = vsel %vm185, %v290, 0
    %v327 = vsel %vm185, %v291, 0
    %329 = vmatprep.subr.mxu0 0.0
    %330 = vmatpush1.msra.mxu0 0.0
    %331 = vmatprep.subr.mxu0 0.0
    %332 = vmatpush1.msra.mxu0 0.0
    %333 = vmatprep.subr.mxu0 0.0
    %334 = vmatpush1.msra.mxu0 0.0
    %335 = vmatprep.subr.mxu0 0.0
    %336 = vmatpush1.msra.mxu0 0.0
    %337 = vmatprep.subr.mxu0 0.0
    %338 = vmatpush1.msra.mxu0 0.0
    %339 = vmatprep.subr.mxu0 0.0
    %340 = vmatpush1.msra.mxu0 0.0
    %341 = vmatprep.subr.mxu0 0.0
    %342 = vmatpush1.msra.mxu0 0.0
    %343 = vmatprep.subr.mxu0 0.0
    %344 = vmatpush1.msra.mxu0 0.0
    %345 = vmatprep.subr.mxu0 0.0
    %346 = vmatpush1.msra.mxu0 0.0
    %347 = vmatprep.subr.mxu0 0.0
    %348 = vmatpush1.msra.mxu0 0.0
    %349 = vmatprep.subr.mxu0 0.0
    %350 = vmatpush1.msra.mxu0 0.0
    %351 = vmatprep.subr.mxu0 0.0
    %352 = vmatpush1.msra.mxu0 0.0
    %353 = vmatprep.subr.mxu0 0.0
    %354 = vmatpush1.msra.mxu0 %v286
    %355 = vmatprep.subr.mxu0 0.0
    %356 = vmatpush1.msra.mxu0 %v285
    %357 = vmatprep.subr.mxu0 0.0
    %358 = vmatpush1.msra.mxu0 %v284
    %359 = vmatprep.subr.mxu0 0.0
    %360 = vmatpush1.msra.mxu0 %v283
    %361 = vmatprep.subr.mxu0 0.0
    %362 = vmatpush2.msra.mxu0 0.0
    %363 = vmatprep.subr.mxu0 0.0
    %364 = vmatpush2.msra.mxu0 0.0
    %365 = vmatprep.subr.mxu0 0.0
    %366 = vmatpush2.msra.mxu0 0.0
    %367 = vmatprep.subr.mxu0 0.0
    %368 = vmatpush2.msra.mxu0 0.0
    %369 = vmatprep.subr.mxu0 0.0
    %370 = vmatpush2.msra.mxu0 0.0
    %371 = vmatprep.subr.mxu0 0.0
    %372 = vmatpush2.msra.mxu0 0.0
    %373 = vmatprep.subr.mxu0 0.0
    %374 = vmatpush2.msra.mxu0 0.0
    %375 = vmatprep.subr.mxu0 0.0
    %376 = vmatpush2.msra.mxu0 0.0
    %377 = vmatprep.subr.mxu0 0.0
    %378 = vmatpush2.msra.mxu0 0.0
    %379 = vmatprep.subr.mxu0 0.0
    %380 = vmatpush2.msra.mxu0 0.0
    %381 = vmatprep.subr.mxu0 0.0
    %382 = vmatpush2.msra.mxu0 0.0
    %383 = vmatprep.subr.mxu0 0.0
    %384 = vmatpush2.msra.mxu0 0.0
    %385 = vmatprep.subr.mxu0 0.0
    %386 = vmatpush2.msra.mxu0 0.0
    %387 = vmatprep.subr.mxu0 0.0
    %388 = vmatpush2.msra.mxu0 0.0
    %389 = vmatprep.subr.mxu0 0.0
    %390 = vmatpush2.msra.mxu0 0.0
    %391 = vmatprep.subr.mxu0 0.0
    %392 = vmatpush2.msra.mxu0 0.0
    %393 = vmatprep.mubr.f32.mxu0 0.0
    %394 = vmatmul.mubr.f32.gmra.mxu0 %v318
    %v395 = vpop.f32.mrf.mxu0
    %v396 = vadd.f32 %v300, %v395
    %v397 = vpop.f32.mrf.mxu0
    %398 = vmatprep.mubr.f32.mxu0 0.0
    %399 = vmatmul.mubr.f32.gmra.mxu0 %v321
    %v400 = vpop.f32.mrf.mxu0
    %v401 = vadd.f32 %v305, %v400
    %v402 = vpop.f32.mrf.mxu0
    %403 = vmatprep.mubr.f32.mxu0 0.0
    %404 = vmatmul.mubr.f32.gmra.mxu0 %v324
    %v405 = vpop.f32.mrf.mxu0
    %v406 = vadd.f32 %v310, %v405
    %v407 = vpop.f32.mrf.mxu0
    %408 = vmatprep.mubr.f32.mxu0 0.0
    %409 = vmatmul.mubr.f32.gmra.mxu0 %v327
    %v410 = vpop.f32.mrf.mxu0
    %v411 = vadd.f32 %v315, %v410
    %v412 = vpop.f32.mrf.mxu0
    %413 = vdwg.mxu0
    %v414 = vtanh.pop %v396
    %v415 = vtanh.pop %v401
    %v416 = vtanh.pop %v406
    %v417 = vtanh.pop %v411
    %v418 = vld [vmem:[%s8] sm:$0x1]
    %v419 = vld [vmem:[#allocation2] sm:$0x1]
    %421 = vset.pattern.permute.xlu0 0
    %422 = vperm.xlu0 %421, %v419
    %v423 = vpop.permute.xlu0 %422
    %v425 = vlaneseq
    %v426 = vshrl.u32 %v425, 7
    %v427 = vsub.s32 0, %v426
    %v428 = vrot.slane %v423, %v427
    %v430 = vsel %vm185, %v418, 0
    %432 = vmatprep.subr.mxu0 0.0
    %433 = vmatpush1.msra.mxu0 0.0
    %434 = vmatprep.subr.mxu0 0.0
    %435 = vmatpush1.msra.mxu0 0.0
    %436 = vmatprep.subr.mxu0 0.0
    %437 = vmatpush1.msra.mxu0 0.0
    %438 = vmatprep.subr.mxu0 0.0
    %439 = vmatpush1.msra.mxu0 0.0
    %440 = vmatprep.subr.mxu0 0.0
    %441 = vmatpush1.msra.mxu0 0.0
    %442 = vmatprep.subr.mxu0 0.0
    %443 = vmatpush1.msra.mxu0 0.0
    %444 = vmatprep.subr.mxu0 0.0
    %445 = vmatpush1.msra.mxu0 0.0
    %446 = vmatprep.subr.mxu0 0.0
    %447 = vmatpush1.msra.mxu0 0.0
    %448 = vmatprep.subr.mxu0 0.0
    %449 = vmatpush1.msra.mxu0 0.0
    %450 = vmatprep.subr.mxu0 0.0
    %451 = vmatpush1.msra.mxu0 0.0
    %452 = vmatprep.subr.mxu0 0.0
    %453 = vmatpush1.msra.mxu0 0.0
    %454 = vmatprep.subr.mxu0 0.0
    %455 = vmatpush1.msra.mxu0 0.0
    %456 = vmatprep.subr.mxu0 0.0
    %457 = vmatpush1.msra.mxu0 %v417
    %458 = vmatprep.subr.mxu0 0.0
    %459 = vmatpush1.msra.mxu0 %v416
    %460 = vmatprep.subr.mxu0 0.0
    %461 = vmatpush1.msra.mxu0 %v415
    %462 = vmatprep.subr.mxu0 0.0
    %463 = vmatpush1.msra.mxu0 %v414
    %464 = vmatprep.subr.mxu0 0.0
    %465 = vmatpush2.msra.mxu0 0.0
    %466 = vmatprep.subr.mxu0 0.0
    %467 = vmatpush2.msra.mxu0 0.0
    %468 = vmatprep.subr.mxu0 0.0
    %469 = vmatpush2.msra.mxu0 0.0
    %470 = vmatprep.subr.mxu0 0.0
    %471 = vmatpush2.msra.mxu0 0.0
    %472 = vmatprep.subr.mxu0 0.0
    %473 = vmatpush2.msra.mxu0 0.0
    %474 = vmatprep.subr.mxu0 0.0
    %475 = vmatpush2.msra.mxu0 0.0
    %476 = vmatprep.subr.mxu0 0.0
    %477 = vmatpush2.msra.mxu0 0.0
    %478 = vmatprep.subr.mxu0 0.0
    %479 = vmatpush2.msra.mxu0 0.0
    %480 = vmatprep.subr.mxu0 0.0
    %481 = vmatpush2.msra.mxu0 0.0
    %482 = vmatprep.subr.mxu0 0.0
    %483 = vmatpush2.msra.mxu0 0.0
    %484 = vmatprep.subr.mxu0 0.0
    %485 = vmatpush2.msra.mxu0 0.0
    %486 = vmatprep.subr.mxu0 0.0
    %487 = vmatpush2.msra.mxu0 0.0
    %488 = vmatprep.subr.mxu0 0.0
    %489 = vmatpush2.msra.mxu0 0.0
    %490 = vmatprep.subr.mxu0 0.0
    %491 = vmatpush2.msra.mxu0 0.0
    %492 = vmatprep.subr.mxu0 0.0
    %493 = vmatpush2.msra.mxu0 0.0
    %494 = vmatprep.subr.mxu0 0.0
    %495 = vmatpush2.msra.mxu0 0.0
    %496 = vmatprep.mubr.f32.mxu0 0.0
    %497 = vmatmul.mubr.f32.gmra.mxu0 %v430
    %v498 = vpop.f32.mrf.mxu0
    %v499 = vadd.f32 %v428, %v498
    %v500 = vpop.f32.mrf.mxu0
    %501 = vdwg.mxu0
    %502 = vst [vmem:[#allocation6] sm:$0x1] %v499
    // Predicated region
    $region46: #{tpu_custom_call.1} parent=1 // pred_check
      _
    $region47: #{tpu_custom_call.1} parent=1 // pred_check_branch
      %504 = sbr.rel (0) target = $region49
    $region48: #{tpu_custom_call.1} parent=1 // pred_region
      %s506 = ssub.s32 16, 16
      %507 = vsyncadd [#allocation4], %s506
      %s509 = sshll.u32 [#allocation6], 4
      %s510 = int_to_ptr.vmem [resolvable:$true] %s509
      %512 = dma.vmem_to_hbm [thread:$0]  %s510, 16, %s10, [#allocation4]
    $region49: #{tpu_custom_call.1} parent=1 // pred_fallthru
      _
    // Predicated region
    $region50: #{tpu_custom_call.1} parent=1 // pred_check
      _
    $region51: #{tpu_custom_call.1} parent=1 // pred_check_branch
      %514 = sbr.rel (0) target = $region53
    $region52: #{tpu_custom_call.1} parent=1 // pred_region
      %515 = dma.done [#allocation4], 16
    $region53: #{tpu_custom_call.1} parent=1 // pred_fallthru
      _
    %516 = vsyncpa [#allocation4], 1
    %517 = vsyncpa [#allocation5], 1

</llo_original>
